<compile_context>
chip_gen: v5e
topology: v5e:2x2
jax: 0.10.0
libtpu: 0.0.40
codegen_flags: <defaults>
</compile_context>

<pallas_src>
import jax
import jax.numpy as jnp
from jax.experimental import pallas as pl
from jax.experimental.pallas import tpu as pltpu

# ---------------- model dimensions ----------------
L_IN = 16       # input length
K = 4           # conv kernel size
STRIDE = 3
C_OUT = 16      # conv out channels
L_OUT = 5       # (16 - 4) // 3 + 1
F = C_OUT * L_OUT          # 80 flattened conv features per sample
H1, H2, H3 = 40, 20, 1
BN_EPS = 1e-5
BLOCK_B = 8     # rows per grid step == one independent BN batch

# ---------------- packed parameter slab (96 x 128 f32, 48 KiB) ----------------
ROW_WBIG = 0          # rows  0:16, lanes  0:80  im2col-folded conv weight (16, 80)
ROW_W1 = 16           # rows 16:96, lanes  0:40  fc1 weight, row order t*16+c (80, 40)
ROW_W2 = 16           # rows 16:56, lanes 40:60  fc2 weight transposed (40, 20)
COL_W2 = 40
ROW_AUX = 56          # rows 56:64, lanes 40:..  small vectors (one 8x128 block)
COL_AUX = 40
AUX_GAMMA, AUX_BETA, AUX_B1, AUX_B2, AUX_W3, AUX_B3 = 0, 1, 2, 3, 4, 5
SLAB_ROWS = 96
SLAB_COLS = 128


def _nn_model_reg_kernel(x_ref, p_ref, out_ref):
    block_b = x_ref.shape[0]
    x = x_ref[...]                                                  # (B, 16)

    # ---- parameter views (all static slices of the resident slab) ----
    wbig = p_ref[ROW_WBIG:ROW_WBIG + L_IN, 0:F]                     # (16, 80)
    w1 = p_ref[ROW_W1:ROW_W1 + F, 0:H1]                             # (80, 40)
    w2 = p_ref[ROW_W2:ROW_W2 + H1, COL_W2:COL_W2 + H2]              # (40, 20)
    aux = p_ref[ROW_AUX:ROW_AUX + 8, :]                             # (8, 128)
    gamma = aux[AUX_GAMMA:AUX_GAMMA + 1, COL_AUX:COL_AUX + F]       # (1, 80) pre-tiled
    beta = aux[AUX_BETA:AUX_BETA + 1, COL_AUX:COL_AUX + F]          # (1, 80) pre-tiled
    b1 = aux[AUX_B1:AUX_B1 + 1, COL_AUX:COL_AUX + H1]               # (1, 40)
    b2 = aux[AUX_B2:AUX_B2 + 1, COL_AUX:COL_AUX + H2]               # (1, 20)
    w3 = aux[AUX_W3:AUX_W3 + 1, COL_AUX:COL_AUX + H2]               # (1, 20)
    b3 = aux[AUX_B3:AUX_B3 + 1, COL_AUX:COL_AUX + 1]                # (1, 1)

    # ---- Conv1d(1,16,k=4,stride=3): ONE matmul, im2col folded into Wbig ----
    # conv[b, t*16+c] = sum_k x[b, 3t+k] * wc[c, k]  (conv bias omitted; it
    # cancels exactly through the batch-mean subtraction below).
    conv = jnp.dot(x, wbig, preferred_element_type=jnp.float32)     # (B, 80)

    # ---- BatchNorm1d(16), training-mode biased batch stats over (b, t) ----
    # pmat[f, g] = 1/n  iff f and g belong to the same channel (f==g mod 16).
    # conv @ pmat sums the 5 position groups per channel AND broadcasts the
    # result back to all 80 lanes in one tiny MXU push: no concat/reshape of
    # the activation, no lane relayouts.
    inv_n = 1.0 / float(block_b * L_OUT)
    fi = jax.lax.broadcasted_iota(jnp.int32, (F, F), 0)
    fj = jax.lax.broadcasted_iota(jnp.int32, (F, F), 1)
    same_ch = ((fi ^ fj) & (C_OUT - 1)) == 0
    pmat = same_ch.astype(jnp.float32) * inv_n                      # (80, 80)

    mean = jnp.sum(jnp.dot(conv, pmat, preferred_element_type=jnp.float32),
                   axis=0, keepdims=True)                           # (1, 80)
    d = conv - mean                                                 # (B, 80)
    var = jnp.sum(jnp.dot(d * d, pmat, preferred_element_type=jnp.float32),
                  axis=0, keepdims=True)                            # (1, 80) biased
    z = d * (gamma * jax.lax.rsqrt(var + BN_EPS)) + beta            # (B, 80)

    # ---- fc1 + relu: single (B,80)@(80,40); W1 rows pre-ordered t*16+c ----
    h1 = jnp.maximum(
        jnp.dot(z, w1, preferred_element_type=jnp.float32) + b1, 0.0)
    # ---- fc2 + relu ----
    h2 = jnp.maximum(
        jnp.dot(h1, w2, preferred_element_type=jnp.float32) + b2, 0.0)
    # ---- fc3: VPU mul + 20-lane reduce; b3 add is a sublane broadcast ----
    out_ref[...] = jnp.sum(h2 * w3, axis=-1, keepdims=True) + b3    # (B, 1)


def nn_model_reg_forward(x, slab, *, block_rows=BLOCK_B):
    """x: (M, 16) f32 with M % block_rows == 0; slab: (96, 128) f32 packed params.

    Each block of `block_rows` rows is processed as one independent forward of
    the module (its own training-mode BN statistics). Returns (M, 1) f32.
    """
    m = x.shape[0]
    assert x.ndim == 2 and x.shape[1] == L_IN
    assert block_rows % 8 == 0 and m % block_rows == 0
    grid = (m // block_rows,)
    return pl.pallas_call(
        _nn_model_reg_kernel,
        out_shape=jax.ShapeDtypeStruct((m, H3), jnp.float32),
        grid=grid,
        in_specs=[
            pl.BlockSpec((block_rows, L_IN), lambda i: (i, 0)),
            pl.BlockSpec((SLAB_ROWS, SLAB_COLS), lambda i: (0, 0)),  # resident
        ],
        out_specs=pl.BlockSpec((block_rows, H3), lambda i: (i, 0)),
        compiler_params=pltpu.CompilerParams(
            dimension_semantics=("parallel",)),   # shards blocks across v7x TCs
    )(x, slab)


def init_torch_params(key):
    """Parameters in PyTorch layout (for the reference and for packing)."""
    ks = jax.random.split(key, 10)
    wc = jax.random.normal(ks[0], (C_OUT, K), jnp.float32) * 0.3      # conv weight
    bc = jax.random.normal(ks[1], (C_OUT,), jnp.float32) * 0.1        # conv bias
    gamma = 1.0 + 0.1 * jax.random.normal(ks[2], (C_OUT,), jnp.float32)
    beta = 0.1 * jax.random.normal(ks[3], (C_OUT,), jnp.float32)
    w1 = jax.random.normal(ks[4], (H1, C_OUT * L_OUT), jnp.float32) * 0.1
    b1 = 0.1 * jax.random.normal(ks[5], (H1,), jnp.float32)
    w2 = jax.random.normal(ks[6], (H2, H1), jnp.float32) * 0.1
    b2 = 0.1 * jax.random.normal(ks[7], (H2,), jnp.float32)
    w3 = jax.random.normal(ks[8], (H3, H2), jnp.float32) * 0.1
    b3 = 0.1 * jax.random.normal(ks[9], (H3,), jnp.float32)
    return (wc, bc, gamma, beta, w1, b1, w2, b2, w3, b3)


def pack_params(tp):
    """Pack all kernel parameters into one lane-aligned (96, 128) f32 slab."""
    wc, bc, gamma, beta, w1, b1, w2, b2, w3, b3 = tp
    del bc  # cancels exactly through BatchNorm's batch-mean subtraction
    slab = jnp.zeros((SLAB_ROWS, SLAB_COLS), jnp.float32)

    # conv weight with im2col folded in: Wbig[3t+k, t*16+c] = wc[c, k]
    wbig = jnp.zeros((L_IN, F), jnp.float32)
    for t in range(L_OUT):
        wbig = wbig.at[STRIDE * t:STRIDE * t + K,
                       t * C_OUT:(t + 1) * C_OUT].set(wc.T)
    slab = slab.at[ROW_WBIG:ROW_WBIG + L_IN, 0:F].set(wbig)

    # fc1 weight reordered so row (t*16 + c) matches torch flat index (c*5 + t)
    w1_r = jnp.transpose(w1.reshape(H1, C_OUT, L_OUT), (2, 1, 0)).reshape(F, H1)
    slab = slab.at[ROW_W1:ROW_W1 + F, 0:H1].set(w1_r)

    slab = slab.at[ROW_W2:ROW_W2 + H1, COL_W2:COL_W2 + H2].set(w2.T)

    # small vectors; gamma/beta pre-tiled to the 80-lane (t*16+c) layout
    slab = slab.at[ROW_AUX + AUX_GAMMA, COL_AUX:COL_AUX + F].set(jnp.tile(gamma, L_OUT))
    slab = slab.at[ROW_AUX + AUX_BETA, COL_AUX:COL_AUX + F].set(jnp.tile(beta, L_OUT))
    slab = slab.at[ROW_AUX + AUX_B1, COL_AUX:COL_AUX + H1].set(b1)
    slab = slab.at[ROW_AUX + AUX_B2, COL_AUX:COL_AUX + H2].set(b2)
    slab = slab.at[ROW_AUX + AUX_W3, COL_AUX:COL_AUX + H2].set(w3[0])
    slab = slab.at[ROW_AUX + AUX_B3, COL_AUX].set(b3[0])
    return slab


def reference_forward(x, tp):
    """Pure-JAX reference mirroring the PyTorch forward (training-mode BN)."""
    wc, bc, gamma, beta, w1, b1, w2, b2, w3, b3 = tp
    xb = x.reshape(-1, 1, L_IN)
    cols = jnp.stack(
        [xb[:, 0, STRIDE * t:STRIDE * t + K] for t in range(L_OUT)], axis=1)  # (B,5,4)
    conv = jnp.einsum("btk,ck->bct", cols, wc) + bc.reshape(1, C_OUT, 1)       # (B,16,5)
    mean = conv.mean(axis=(0, 2), keepdims=True)
    var = ((conv - mean) ** 2).mean(axis=(0, 2), keepdims=True)
    z = (conv - mean) / jnp.sqrt(var + BN_EPS)
    z = z * gamma.reshape(1, C_OUT, 1) + beta.reshape(1, C_OUT, 1)
    flat = z.reshape(-1, C_OUT * L_OUT)                                        # channel-major
    h1 = jnp.maximum(flat @ w1.T + b1, 0.0)
    h2 = jnp.maximum(h1 @ w2.T + b2, 0.0)
    return h2 @ w3.T + b3


if __name__ == "__main__":
    key = jax.random.PRNGKey(0)
    k_x, k_p, k_xb = jax.random.split(key, 3)

    torch_params = init_torch_params(k_p)
    slab = pack_params(torch_params)

    # --- single 8-row batch: exactly the original module forward ---
    x = jax.random.normal(k_x, (BLOCK_B, L_IN), jnp.float32)
    out = jax.block_until_ready(nn_model_reg_forward(x, slab))
    ref = reference_forward(x, torch_params)
    assert out.shape == (BLOCK_B, H3)
    assert float(jnp.max(jnp.abs(out - ref))) < 1e-3, "mismatch vs reference"

    # --- 4 independent 8-row batches in one call (parallel grid axis) ---
    n_blocks = 4
    xb = jax.random.normal(k_xb, (n_blocks * BLOCK_B, L_IN), jnp.float32)
    outb = jax.block_until_ready(nn_model_reg_forward(xb, slab))
    refb = jnp.concatenate(
        [reference_forward(xb[i * BLOCK_B:(i + 1) * BLOCK_B], torch_params)
         for i in range(n_blocks)], axis=0)
    assert outb.shape == (n_blocks * BLOCK_B, H3)
    assert float(jnp.max(jnp.abs(outb - refb))) < 1e-3, "batched mismatch vs reference"

    print("KERNEL_OK")
</pallas_src>

<mosaic_0001>
module attributes {stable_mosaic.version = 11 : i64} {
  func.func @_nn_model_reg_kernel(%arg0: i32, %arg1: memref<8x16xf32, #tpu.memory_space<vmem>>, %arg2: memref<96x128xf32, #tpu.memory_space<vmem>>, %arg3: memref<8x1xf32, #tpu.memory_space<vmem>>) attributes {dimension_semantics = [#tpu.dimension_semantics<parallel>], iteration_bounds = array<i64: 1>, scalar_prefetch = 0 : i64, scratch_operands = 0 : i64, tpu.core_type = #tpu.core_type<tc>, window_params = [{transform_indices = @transform_0, window_bounds = array<i64: 8, 16>}, {pipeline_mode = #tpu.pipeline_mode<synchronous>, transform_indices = @transform_1, window_bounds = array<i64: 96, 128>}, {transform_indices = @transform_2, window_bounds = array<i64: 8, 1>}]} {
    %c0 = arith.constant 0 : index
    %c0_0 = arith.constant 0 : index
    %0 = vector.load %arg1[%c0, %c0_0] : memref<8x16xf32, #tpu.memory_space<vmem>>, vector<8x16xf32>
    %c0_1 = arith.constant 0 : index
    %c0_2 = arith.constant 0 : index
    %1 = vector.load %arg2[%c0_1, %c0_2] : memref<96x128xf32, #tpu.memory_space<vmem>>, vector<16x80xf32>
    %c16 = arith.constant 16 : index
    %c0_3 = arith.constant 0 : index
    %2 = vector.load %arg2[%c16, %c0_3] : memref<96x128xf32, #tpu.memory_space<vmem>>, vector<80x40xf32>
    %c16_4 = arith.constant 16 : index
    %c40 = arith.constant 40 : index
    %3 = vector.load %arg2[%c16_4, %c40] : memref<96x128xf32, #tpu.memory_space<vmem>>, vector<40x20xf32>
    %c56 = arith.constant 56 : index
    %c0_5 = arith.constant 0 : index
    %4 = vector.load %arg2[%c56, %c0_5] : memref<96x128xf32, #tpu.memory_space<vmem>>, vector<8x128xf32>
    %5 = vector.extract_strided_slice %4 {offsets = [0, 40], sizes = [1, 80], strides = [1, 1]} : vector<8x128xf32> to vector<1x80xf32>
    %6 = vector.extract_strided_slice %4 {offsets = [1, 40], sizes = [1, 80], strides = [1, 1]} : vector<8x128xf32> to vector<1x80xf32>
    %7 = vector.extract_strided_slice %4 {offsets = [2, 40], sizes = [1, 40], strides = [1, 1]} : vector<8x128xf32> to vector<1x40xf32>
    %8 = vector.extract_strided_slice %4 {offsets = [3, 40], sizes = [1, 20], strides = [1, 1]} : vector<8x128xf32> to vector<1x20xf32>
    %9 = vector.extract_strided_slice %4 {offsets = [4, 40], sizes = [1, 20], strides = [1, 1]} : vector<8x128xf32> to vector<1x20xf32>
    %10 = vector.extract_strided_slice %4 {offsets = [5, 40], sizes = [1, 1], strides = [1, 1]} : vector<8x128xf32> to vector<1x1xf32>
    %cst = arith.constant dense<0.000000e+00> : vector<8x80xf32>
    %11 = tpu.matmul %0, %1, %cst {dimension_numbers = #tpu.dot_dimension_numbers<[1], [0], [0], [1], [0, 0, 1, 1], [], []>} : vector<8x16xf32>, vector<16x80xf32>, vector<8x80xf32> -> vector<8x80xf32>
    %12 = tpu.iota {dimensions = array<i32: 0>} : vector<80x80xi32>
    %13 = tpu.iota {dimensions = array<i32: 1>} : vector<80x80xi32>
    %14 = arith.xori %12, %13 : vector<80x80xi32>
    %c15_i32 = arith.constant 15 : i32
    %15 = vector.broadcast %c15_i32 : i32 to vector<80x80xi32>
    %16 = arith.andi %14, %15 : vector<80x80xi32>
    %c0_i32 = arith.constant 0 : i32
    %17 = vector.broadcast %c0_i32 : i32 to vector<80x80xi32>
    %18 = arith.cmpi eq, %16, %17 : vector<80x80xi32>
    %19 = arith.extui %18 : vector<80x80xi1> to vector<80x80xi32>
    %20 = arith.sitofp %19 : vector<80x80xi32> to vector<80x80xf32>
    %cst_6 = arith.constant 2.500000e-02 : f32
    %21 = vector.broadcast %cst_6 : f32 to vector<80x80xf32>
    %22 = arith.mulf %20, %21 : vector<80x80xf32>
    %cst_7 = arith.constant dense<0.000000e+00> : vector<8x80xf32>
    %23 = tpu.matmul %11, %22, %cst_7 {dimension_numbers = #tpu.dot_dimension_numbers<[1], [0], [0], [1], [0, 0, 1, 1], [], []>} : vector<8x80xf32>, vector<80x80xf32>, vector<8x80xf32> -> vector<8x80xf32>
    %cst_8 = arith.constant dense<0.000000e+00> : vector<80xf32>
    %24 = vector.multi_reduction <add>, %23, %cst_8 [0] : vector<8x80xf32> to vector<80xf32>
    %25 = vector.shape_cast %24 : vector<80xf32> to vector<1x80xf32>
    %26 = vector.broadcast %25 : vector<1x80xf32> to vector<8x80xf32>
    %27 = arith.subf %11, %26 : vector<8x80xf32>
    %28 = arith.mulf %27, %27 : vector<8x80xf32>
    %cst_9 = arith.constant dense<0.000000e+00> : vector<8x80xf32>
    %29 = tpu.matmul %28, %22, %cst_9 {dimension_numbers = #tpu.dot_dimension_numbers<[1], [0], [0], [1], [0, 0, 1, 1], [], []>} : vector<8x80xf32>, vector<80x80xf32>, vector<8x80xf32> -> vector<8x80xf32>
    %cst_10 = arith.constant dense<0.000000e+00> : vector<80xf32>
    %30 = vector.multi_reduction <add>, %29, %cst_10 [0] : vector<8x80xf32> to vector<80xf32>
    %31 = vector.shape_cast %30 : vector<80xf32> to vector<1x80xf32>
    %cst_11 = arith.constant 9.99999974E-6 : f32
    %32 = vector.broadcast %cst_11 : f32 to vector<1x80xf32>
    %33 = arith.addf %31, %32 : vector<1x80xf32>
    %34 = math.rsqrt %33 : vector<1x80xf32>
    %35 = arith.mulf %5, %34 : vector<1x80xf32>
    %36 = vector.broadcast %35 : vector<1x80xf32> to vector<8x80xf32>
    %37 = arith.mulf %27, %36 : vector<8x80xf32>
    %38 = vector.broadcast %6 : vector<1x80xf32> to vector<8x80xf32>
    %39 = arith.addf %37, %38 : vector<8x80xf32>
    %cst_12 = arith.constant dense<0.000000e+00> : vector<8x40xf32>
    %40 = tpu.matmul %39, %2, %cst_12 {dimension_numbers = #tpu.dot_dimension_numbers<[1], [0], [0], [1], [0, 0, 1, 1], [], []>} : vector<8x80xf32>, vector<80x40xf32>, vector<8x40xf32> -> vector<8x40xf32>
    %41 = vector.broadcast %7 : vector<1x40xf32> to vector<8x40xf32>
    %42 = arith.addf %40, %41 : vector<8x40xf32>
    %cst_13 = arith.constant 0.000000e+00 : f32
    %43 = vector.broadcast %cst_13 : f32 to vector<8x40xf32>
    %44 = arith.maximumf %42, %43 : vector<8x40xf32>
    %cst_14 = arith.constant dense<0.000000e+00> : vector<8x20xf32>
    %45 = tpu.matmul %44, %3, %cst_14 {dimension_numbers = #tpu.dot_dimension_numbers<[1], [0], [0], [1], [0, 0, 1, 1], [], []>} : vector<8x40xf32>, vector<40x20xf32>, vector<8x20xf32> -> vector<8x20xf32>
    %46 = vector.broadcast %8 : vector<1x20xf32> to vector<8x20xf32>
    %47 = arith.addf %45, %46 : vector<8x20xf32>
    %cst_15 = arith.constant 0.000000e+00 : f32
    %48 = vector.broadcast %cst_15 : f32 to vector<8x20xf32>
    %49 = arith.maximumf %47, %48 : vector<8x20xf32>
    %50 = vector.broadcast %9 : vector<1x20xf32> to vector<8x20xf32>
    %51 = arith.mulf %49, %50 : vector<8x20xf32>
    %cst_16 = arith.constant dense<0.000000e+00> : vector<8xf32>
    %52 = vector.multi_reduction <add>, %51, %cst_16 [1] : vector<8x20xf32> to vector<8xf32>
    %53 = vector.shape_cast %52 : vector<8xf32> to vector<8x1xf32>
    %54 = vector.broadcast %10 : vector<1x1xf32> to vector<8x1xf32>
    %55 = arith.addf %53, %54 : vector<8x1xf32>
    %c0_17 = arith.constant 0 : index
    %c0_18 = arith.constant 0 : index
    %56 = vector.load %arg3[%c0_17, %c0_18] : memref<8x1xf32, #tpu.memory_space<vmem>>, vector<8x1xf32>
    tpu.vector_store %arg3[%c0_17, %c0_18], %55 {strides = array<i32>} : memref<8x1xf32, #tpu.memory_space<vmem>>, vector<8x1xf32>,
    return
  }
  func.func @transform_0(%arg0: i32) -> (i32, i32) {
    %c0_i32 = arith.constant 0 : i32
    %c0_i32_0 = arith.constant 0 : i32
    return %arg0, %c0_i32 : i32, i32
  }
  func.func @transform_1(%arg0: i32) -> (i32, i32) {
    %c0_i32 = arith.constant 0 : i32
    %c0_i32_0 = arith.constant 0 : i32
    %c0_i32_1 = arith.constant 0 : i32
    return %c0_i32, %c0_i32_0 : i32, i32
  }
  func.func @transform_2(%arg0: i32) -> (i32, i32) {
    %c0_i32 = arith.constant 0 : i32
    %c0_i32_0 = arith.constant 0 : i32
    return %arg0, %c0_i32 : i32, i32
  }
}

</mosaic_0001>

<llo_original>
// kernel: tpu_custom_call.1
$region0: #{tpu_custom_call.1}
  #allocation0 [shape = 'u32[]', space=smem, size = 0x4, offset = 0x4, fixed_abs, tag = 'smem constant byte address 0x4 - core index']
  #allocation1 [shape = 'u32[72,128]{1,0:T(1,128)}', space=vmem, size = 0x9000, scoped, tag = 'internal scratch']
  %s0 = inlined_call_operand.hbm [shape: f32[8,16], index: 0, kind: input, shape index: {}]
  %s1 = inlined_call_operand.hbm [shape: f32[96,128], index: 1, kind: input, shape index: {}]
  %s2 = inlined_call_operand.vmem [shape: f32[8,1], index: 2, kind: output, shape index: {}]
  %s3 = sld [smem:[#allocation0]]
  $region26: #{tpu_custom_call.1} parent=0
    _
  %s5 = ssub.s32 1, %s3
  %s6 = scalar_select 0, %s5, %s3
  $region1: #{tpu_custom_call.1} parent=0
    #allocation2 [shape = 'u8[4096]{0}', space=vmem, size = 0x1000, scoped, tag = 'input window, operand 0, single buffered']
    #allocation3 [shape = 's32[1]{0}', space=sflag, size = 0x4, scoped, tag = 'scoped memory for tpu_custom_call.1']
    #allocation4 [shape = 'u8[49152]{0}', space=vmem, size = 0xc000, scoped, tag = 'input window, operand 1, single buffered']
    #allocation5 [shape = 's32[1]{0}', space=sflag, size = 0x4, scoped, tag = 'scoped memory for tpu_custom_call.1']
    %7 = vsyncpa [#allocation3], 0
    %8 = vsyncpa [#allocation5], 0
    // Predicated region
    $region2: #{tpu_custom_call.1} parent=1 // pred_check
      _
    $region3: #{tpu_custom_call.1} parent=1 // pred_check_branch
      %10 = sbr.rel (0) target = $region5
    $region4: #{tpu_custom_call.1} parent=1 // pred_region
      %12 = vsyncadd [#allocation3], 0
      %s14 = sshll.u32 %s0, 4
      %s15 = int_to_ptr.hbm [resolvable:$true] %s14
      %s16 = sshll.u32 [#allocation2], 4
      %s17 = int_to_ptr.vmem [resolvable:$true] %s16
      %19 = dma.hbm_to_vmem [thread:$0]  %s15, 128, %s17, [#allocation3]
    $region5: #{tpu_custom_call.1} parent=1 // pred_fallthru
      _
    // Predicated region
    $region6: #{tpu_custom_call.1} parent=1 // pred_check
      _
    $region7: #{tpu_custom_call.1} parent=1 // pred_check_branch
      %21 = sbr.rel (0) target = $region9
    $region8: #{tpu_custom_call.1} parent=1 // pred_region
      %23 = vsyncadd [#allocation5], 0
      %s24 = sshll.u32 %s1, 4
      %s25 = int_to_ptr.hbm [resolvable:$true] %s24
      %s26 = sshll.u32 [#allocation4], 4
      %s27 = int_to_ptr.vmem [resolvable:$true] %s26
      %32 = dma.hbm_to_vmem [thread:$0]  %s25, 1536, %s27, [#allocation5], 128, 128, 8
    $region9: #{tpu_custom_call.1} parent=1 // pred_fallthru
      _
    // Predicated region
    $region10: #{tpu_custom_call.1} parent=1 // pred_check
      _
    $region11: #{tpu_custom_call.1} parent=1 // pred_check_branch
      %34 = sbr.rel (0) target = $region13
    $region12: #{tpu_custom_call.1} parent=1 // pred_region
      %36 = dma.done [#allocation3], 128
    $region13: #{tpu_custom_call.1} parent=1 // pred_fallthru
      _
    // Predicated region
    $region14: #{tpu_custom_call.1} parent=1 // pred_check
      _
    $region15: #{tpu_custom_call.1} parent=1 // pred_check_branch
      %38 = sbr.rel (0) target = $region17
    $region16: #{tpu_custom_call.1} parent=1 // pred_region
      %40 = dma.done [#allocation5], 1536
    $region17: #{tpu_custom_call.1} parent=1 // pred_fallthru
      _
    %v41 = vld [vmem:[#allocation2] sm:$0xff]
    %v42 = vld [vmem:[#allocation4] sm:$0xff]
    %v43 = vld [vmem:[#allocation4 + $0x8] sm:$0xff]
    %v44 = vld [vmem:[#allocation4 + $0x10] sm:$0xff]
    %v45 = vld [vmem:[#allocation4 + $0x18] sm:$0xff]
    %v46 = vld [vmem:[#allocation4 + $0x20] sm:$0xff]
    %v47 = vld [vmem:[#allocation4 + $0x28] sm:$0xff]
    %v48 = vld [vmem:[#allocation4 + $0x30] sm:$0xff]
    %v49 = vld [vmem:[#allocation4 + $0x38] sm:$0xff]
    %v50 = vld [vmem:[#allocation4 + $0x40] sm:$0xff]
    %v51 = vld [vmem:[#allocation4 + $0x48] sm:$0xff]
    %v52 = vld [vmem:[#allocation4 + $0x50] sm:$0xff]
    %v53 = vld [vmem:[#allocation4 + $0x58] sm:$0xff]
    %v54 = vld [vmem:[#allocation4 + $0x10] sm:$0xff]
    %v55 = vld [vmem:[#allocation4 + $0x18] sm:$0xff]
    %v56 = vld [vmem:[#allocation4 + $0x20] sm:$0xff]
    %v57 = vld [vmem:[#allocation4 + $0x28] sm:$0xff]
    %v58 = vld [vmem:[#allocation4 + $0x30] sm:$0xff]
    %v59 = vld [vmem:[#allocation4 + $0x38] sm:$0xff]
    %vm60 = vcmask 130048
    %v62 = vsel %vm60, %v41, 0
    %64 = vmatpush.msra.mxu0 0.0
    %65 = vmatpush.msra.mxu0 0.0
    %66 = vmatpush.msra.mxu0 0.0
    %67 = vmatpush.msra.mxu0 0.0
    %68 = vmatpush.msra.mxu0 0.0
    %69 = vmatpush.msra.mxu0 0.0
    %70 = vmatpush.msra.mxu0 0.0
    %71 = vmatpush.msra.mxu0 0.0
    %72 = vmatpush.msra.mxu0 0.0
    %73 = vmatpush.msra.mxu0 0.0
    %74 = vmatpush.msra.mxu0 0.0
    %75 = vmatpush.msra.mxu0 0.0
    %76 = vmatpush.msra.mxu0 0.0
    %77 = vmatpush.msra.mxu0 0.0
    %78 = vmatpush.msra.mxu0 %v43
    %79 = vmatpush.msra.mxu0 %v42
    %80 = vmatmul.f32.gmra.mxu0 %v62
    %v81 = vpop.f32.mrf.mxu0
    %v82 = vadd.f32 0.0, %v81
    %83 = vdwg.mxu0
    %v84 = vlaneseq
    %v85 = vshrl.u32 %v84, 7
    %v86 = vadd.s32 %v85, 8
    %v87 = vadd.s32 %v85, 16
    %v88 = vadd.s32 %v85, 24
    %v89 = vadd.s32 %v85, 32
    %v90 = vadd.s32 %v85, 40
    %v91 = vadd.s32 %v85, 48
    %v92 = vadd.s32 %v85, 56
    %v93 = vadd.s32 %v85, 64
    %v94 = vadd.s32 %v85, 72
    %v95 = vlaneseq
    %v96 = vand.u32 %v95, 127
    %v97 = vxor.u32 %v85, %v96
    %v98 = vxor.u32 %v86, %v96
    %v99 = vxor.u32 %v87, %v96
    %v100 = vxor.u32 %v88, %v96
    %v101 = vxor.u32 %v89, %v96
    %v102 = vxor.u32 %v90, %v96
    %v103 = vxor.u32 %v91, %v96
    %v104 = vxor.u32 %v92, %v96
    %v105 = vxor.u32 %v93, %v96
    %v106 = vxor.u32 %v94, %v96
    %v107 = vand.u32 %v97, 15
    %v108 = vand.u32 %v98, 15
    %v109 = vand.u32 %v99, 15
    %v110 = vand.u32 %v100, 15
    %v111 = vand.u32 %v101, 15
    %v112 = vand.u32 %v102, 15
    %v113 = vand.u32 %v103, 15
    %v114 = vand.u32 %v104, 15
    %v115 = vand.u32 %v105, 15
    %v116 = vand.u32 %v106, 15
    %vm117 = vcmp.eq.s32.totalorder %v107, 0
    %vm118 = vcmp.eq.s32.totalorder %v108, 0
    %vm119 = vcmp.eq.s32.totalorder %v109, 0
    %vm120 = vcmp.eq.s32.totalorder %v110, 0
    %vm121 = vcmp.eq.s32.totalorder %v111, 0
    %vm122 = vcmp.eq.s32.totalorder %v112, 0
    %vm123 = vcmp.eq.s32.totalorder %v113, 0
    %vm124 = vcmp.eq.s32.totalorder %v114, 0
    %vm125 = vcmp.eq.s32.totalorder %v115, 0
    %vm126 = vcmp.eq.s32.totalorder %v116, 0
    %v127 = vsel %vm117, 1, 0
    %v128 = vsel %vm118, 1, 0
    %v129 = vsel %vm119, 1, 0
    %v130 = vsel %vm120, 1, 0
    %v131 = vsel %vm121, 1, 0
    %v132 = vsel %vm122, 1, 0
    %v133 = vsel %vm123, 1, 0
    %v134 = vsel %vm124, 1, 0
    %v135 = vsel %vm125, 1, 0
    %v136 = vsel %vm126, 1, 0
    %v137 = vcvt.s32.f32 %v127
    %v138 = vcvt.s32.f32 %v128
    %v139 = vcvt.s32.f32 %v129
    %v140 = vcvt.s32.f32 %v130
    %v141 = vcvt.s32.f32 %v131
    %v142 = vcvt.s32.f32 %v132
    %v143 = vcvt.s32.f32 %v133
    %v144 = vcvt.s32.f32 %v134
    %v145 = vcvt.s32.f32 %v135
    %v146 = vcvt.s32.f32 %v136
    %v147 = vmul.f32 %v137, 0.025
    %v148 = vmul.f32 %v138, 0.025
    %v149 = vmul.f32 %v139, 0.025
    %v150 = vmul.f32 %v140, 0.025
    %v151 = vmul.f32 %v141, 0.025
    %v152 = vmul.f32 %v142, 0.025
    %v153 = vmul.f32 %v143, 0.025
    %v154 = vmul.f32 %v144, 0.025
    %v155 = vmul.f32 %v145, 0.025
    %v156 = vmul.f32 %v146, 0.025
    %vm157 = vcmask 654336
    %v159 = vsel %vm157, %v82, 0
    %161 = vmatpush.msra.mxu0 0.0
    %162 = vmatpush.msra.mxu0 0.0
    %163 = vmatpush.msra.mxu0 0.0
    %164 = vmatpush.msra.mxu0 0.0
    %165 = vmatpush.msra.mxu0 0.0
    %166 = vmatpush.msra.mxu0 0.0
    %167 = vmatpush.msra.mxu0 %v156
    %168 = vmatpush.msra.mxu0 %v155
    %169 = vmatpush.msra.mxu0 %v154
    %170 = vmatpush.msra.mxu0 %v153
    %171 = vmatpush.msra.mxu0 %v152
    %172 = vmatpush.msra.mxu0 %v151
    %173 = vmatpush.msra.mxu0 %v150
    %174 = vmatpush.msra.mxu0 %v149
    %175 = vmatpush.msra.mxu0 %v148
    %176 = vmatpush.msra.mxu0 %v147
    %177 = vmatmul.f32.gmra.mxu0 %v159
    %v178 = vpop.f32.mrf.mxu0
    %v179 = vadd.f32 0.0, %v178
    %180 = vdwg.mxu0
    %v181 = vsel %vm157, %v179, 0.0
    %v182 = vrot.slane %v181, 4
    %v183 = vadd.f32 %v181, %v182
    %v184 = vrot.slane %v183, 2
    %v185 = vadd.f32 %v183, %v184
    %v186 = vrot.slane %v185, 1
    %v187 = vadd.f32 %v185, %v186
    %v188 = vsub.f32 %v82, %v187
    %v189 = vmul.f32 %v188, %v188
    %v191 = vsel %vm157, %v189, 0
    %193 = vmatpush.msra.mxu0 0.0
    %194 = vmatpush.msra.mxu0 0.0
    %195 = vmatpush.msra.mxu0 0.0
    %196 = vmatpush.msra.mxu0 0.0
    %197 = vmatpush.msra.mxu0 0.0
    %198 = vmatpush.msra.mxu0 0.0
    %199 = vmatpush.msra.mxu0 %v156
    %200 = vmatpush.msra.mxu0 %v155
    %201 = vmatpush.msra.mxu0 %v154
    %202 = vmatpush.msra.mxu0 %v153
    %203 = vmatpush.msra.mxu0 %v152
    %204 = vmatpush.msra.mxu0 %v151
    %205 = vmatpush.msra.mxu0 %v150
    %206 = vmatpush.msra.mxu0 %v149
    %207 = vmatpush.msra.mxu0 %v148
    %208 = vmatpush.msra.mxu0 %v147
    %209 = vmatmul.f32.gmra.mxu0 %v191
    %v210 = vpop.f32.mrf.mxu0
    %v211 = vadd.f32 0.0, %v210
    %212 = vdwg.mxu0
    %v213 = vsel %vm157, %v211, 0.0
    %v214 = vrot.slane %v213, 4
    %v215 = vadd.f32 %v213, %v214
    %v216 = vrot.slane %v215, 2
    %v217 = vadd.f32 %v215, %v216
    %v218 = vrot.slane %v217, 1
    %v219 = vadd.f32 %v217, %v218
    %v220 = vadd.f32 %v219, 1e-05
    %v221 = vrsqrt.pop %v220
    %v222 = vmul.f32 %v221, %v220
    %v223 = vmul.f32 %v222, %v221
    %v224 = vmul.f32 0.5, %v223
    %v225 = vsub.f32 1.5, %v224
    %v226 = vmul.f32 %v221, %v225
    %vm227 = vweird.f32 %v220
    %vm228 = vweird.f32 %v221
    %vm229 = vmor %vm227, %vm228
    %v230 = vsel %vm229, %v221, %v226
    %232 = vrot.lane.b32.xlu0 %v230, 40
    %v233 = vpop.permute.xlu0 %232
    %v235 = vmul.f32 %v59, %v233
    %v236 = vperm.slane %v235, 0
    %238 = vrot.lane.b32.xlu0 %v236, 88
    %v239 = vpop.permute.xlu0 %238
    %v241 = vmul.f32 %v188, %v239
    %v242 = vperm.slane %v59, 1
    %244 = vrot.lane.b32.xlu0 %v242, 88
    %v245 = vpop.permute.xlu0 %244
    %v247 = vadd.f32 %v241, %v245
    %v248 = vperm.slane %v59, 2
    %250 = vrot.lane.b32.xlu0 %v248, 88
    %v251 = vpop.permute.xlu0 %250
    %v254 = vsel %vm157, %v247, 0
    %256 = vmatpush.msra.mxu0 0.0
    %257 = vmatpush.msra.mxu0 0.0
    %258 = vmatpush.msra.mxu0 0.0
    %259 = vmatpush.msra.mxu0 0.0
    %260 = vmatpush.msra.mxu0 0.0
    %261 = vmatpush.msra.mxu0 0.0
    %262 = vmatpush.msra.mxu0 %v53
    %263 = vmatpush.msra.mxu0 %v52
    %264 = vmatpush.msra.mxu0 %v51
    %265 = vmatpush.msra.mxu0 %v50
    %266 = vmatpush.msra.mxu0 %v49
    %267 = vmatpush.msra.mxu0 %v48
    %268 = vmatpush.msra.mxu0 %v47
    %269 = vmatpush.msra.mxu0 %v46
    %270 = vmatpush.msra.mxu0 %v45
    %271 = vmatpush.msra.mxu0 %v44
    %272 = vmatmul.f32.gmra.mxu0 %v254
    %v273 = vpop.f32.mrf.mxu0
    %v274 = vadd.f32 %v251, %v273
    %275 = vdwg.mxu0
    %v276 = vmax.f32 %v274, 0.0
    %v277 = vperm.slane %v59, 3
    %283 = vrot.lane.b32.xlu0 %v54, 88
    %v284 = vpop.permute.xlu0 %283
    %285 = vrot.lane.b32.xlu0 %v55, 88
    %v286 = vpop.permute.xlu0 %285
    %287 = vrot.lane.b32.xlu0 %v56, 88
    %v288 = vpop.permute.xlu0 %287
    %289 = vrot.lane.b32.xlu0 %v57, 88
    %v290 = vpop.permute.xlu0 %289
    %291 = vrot.lane.b32.xlu0 %v58, 88
    %v292 = vpop.permute.xlu0 %291
    %299 = vrot.lane.b32.xlu0 %v277, 88
    %v300 = vpop.permute.xlu0 %299
    %vm302 = vcmask 326656
    %v304 = vsel %vm302, %v276, 0
    %306 = vmatpush.msra.mxu0 0.0
    %307 = vmatpush.msra.mxu0 0.0
    %308 = vmatpush.msra.mxu0 0.0
    %309 = vmatpush.msra.mxu0 0.0
    %310 = vmatpush.msra.mxu0 0.0
    %311 = vmatpush.msra.mxu0 0.0
    %312 = vmatpush.msra.mxu0 0.0
    %313 = vmatpush.msra.mxu0 0.0
    %314 = vmatpush.msra.mxu0 0.0
    %315 = vmatpush.msra.mxu0 0.0
    %316 = vmatpush.msra.mxu0 0.0
    %317 = vmatpush.msra.mxu0 %v292
    %318 = vmatpush.msra.mxu0 %v290
    %319 = vmatpush.msra.mxu0 %v288
    %320 = vmatpush.msra.mxu0 %v286
    %321 = vmatpush.msra.mxu0 %v284
    %322 = vmatmul.f32.gmra.mxu0 %v304
    %v323 = vpop.f32.mrf.mxu0
    %v324 = vadd.f32 %v300, %v323
    %325 = vdwg.mxu0
    %v326 = vmax.f32 %v324, 0.0
    %v327 = vperm.slane %v59, 4
    %329 = vrot.lane.b32.xlu0 %v327, 88
    %v330 = vpop.permute.xlu0 %329
    %v332 = vmul.f32 %v326, %v330
    %vm333 = vcmask 162816
    %v334 = vsel %vm333, %v332, 0.0
    %335 = vadd.xlane.f32.xlu0 %v334
    %v336 = vpop.xlane.xlu0 %335
    %v337 = vperm.slane %v59, 5
    %v338 = vadd.f32 %v336, %v337
    %340 = vrot.lane.b32.xlu0 %v338, 88
    %v341 = vpop.permute.xlu0 %340
    %vm343 = vcmask 7168
    %344 = vst.msk [vmem:[%s2] sm:$0xff] %vm343, %v341
    // Predicated region
    $region18: #{tpu_custom_call.1} parent=1 // pred_check
      _
    $region19: #{tpu_custom_call.1} parent=1 // pred_check_branch
      %346 = sbr.rel (0) target = $region21
    $region20: #{tpu_custom_call.1} parent=1 // pred_region
      _
    $region21: #{tpu_custom_call.1} parent=1 // pred_fallthru
      _
    // Predicated region
    $region22: #{tpu_custom_call.1} parent=1 // pred_check
      _
    $region23: #{tpu_custom_call.1} parent=1 // pred_check_branch
      %348 = sbr.rel (0) target = $region25
    $region24: #{tpu_custom_call.1} parent=1 // pred_region
      _
    $region25: #{tpu_custom_call.1} parent=1 // pred_fallthru
      _
    %349 = vsyncpa [#allocation3], 1
    %350 = vsyncpa [#allocation5], 1

</llo_original>
